<compile_context>
chip_gen: v7x
topology: tpu7x:2x2x1
jax: 0.10.0
libtpu: 0.0.40
codegen_flags: <defaults>
</compile_context>

<pallas_src>
import functools

import jax
import jax.numpy as jnp
from jax import lax
from jax.experimental import pallas as pl
from jax.experimental.pallas import tpu as pltpu


def _round_up(x, m):
    return ((x + m - 1) // m) * m


def _entailment_kernel(mask_ref, emb_ref, sa_ref, sb_ref, tgt_ref,
                       pred_ref, stats_ref, acc_ref, *,
                       n_groups, n_groups_padded, thresh_high, thresh_low):
    """Grid axis 0 iterates tiles of the tree (T) reduction axis."""
    k = pl.program_id(0)

    @pl.when(k == 0)
    def _():
        acc_ref[...] = jnp.zeros_like(acc_ref)

    # Fused aggregation matmul: stacked 0/1 membership tile [2Gp, Tt] (bf16,
    # exact) against the bf16 embeddings tile [Tt, H]; per-text partial sums
    # accumulate in f32 VMEM scratch across the T tiles.
    acc_ref[...] += jnp.dot(mask_ref[...], emb_ref[...],
                            preferred_element_type=jnp.float32)

    @pl.when(k == pl.num_programs(0) - 1)
    def _():
        gp = n_groups_padded
        a = acc_ref[:gp, :]            # summed text-A embeddings [Gp, H] f32
        b = acc_ref[gp:, :]            # summed text-B embeddings [Gp, H] f32

        # Three H-reductions, each landing lane-dense as [1, Gp]; no
        # concatenated [3Gp, H] temporary.
        ones = jnp.ones((1, a.shape[1]), jnp.float32)
        dims = (((1,), (1,)), ((), ()))
        dotp = lax.dot_general(ones, a * b, dims,
                               preferred_element_type=jnp.float32)
        saa = lax.dot_general(ones, a * a, dims,
                              preferred_element_type=jnp.float32)
        sbb = lax.dot_general(ones, b * b, dims,
                              preferred_element_type=jnp.float32)

        # Fold the mean-normalization (uniform per-text weight, e.g.
        # 1/trees_per_text) back in before the eps clamp so the result matches
        # F.cosine_similarity on the *mean* text embeddings.
        sa = sa_ref[...]               # [1, Gp]
        sb = sb_ref[...]
        dotp = dotp * (sa * sb)
        saa = saa * (sa * sa)
        sbb = sbb * (sb * sb)

        # cosine_sim = dot / (max(||a||, eps) * max(||b||, eps)), eps = 1e-8;
        # rsqrt(max(x, eps^2)) == 1 / max(sqrt(x), eps) and runs on the EUP.
        eps2 = jnp.float32(1e-16)
        sim = dotp * lax.rsqrt(jnp.maximum(saa, eps2)) \
                   * lax.rsqrt(jnp.maximum(sbb, eps2))                 # [1, Gp]
        # Padded group lanes: mask rows are all-zero -> dotp == 0 -> sim == 0.

        preds = jnp.where(sim > jnp.float32(thresh_high), jnp.int32(1),
                          jnp.where(sim < jnp.float32(thresh_low),
                                    jnp.int32(-1), jnp.int32(0)))      # [1, Gp]
        pred_ref[...] = preds                                          # lane-dense

        tgt = tgt_ref[...]                                             # [1, Gp]
        lane = lax.broadcasted_iota(jnp.int32, (1, gp), 1)
        valid = (lane < n_groups).astype(jnp.float32)                  # pad mask
        inv_g = jnp.float32(1.0 / n_groups)

        diff = (sim - tgt) * valid
        loss = jnp.sum(diff * diff) * inv_g                            # nn.MSELoss
        acc = jnp.sum((preds == tgt.astype(jnp.int32)).astype(jnp.float32)
                      * valid) * inv_g                                 # accuracy

        stats_ref[:, 0:1] = loss.reshape(1, 1)
        stats_ref[:, 1:2] = acc.reshape(1, 1)


def text_level_entailment_loss(embeddings, agg_a, agg_b, target,
                               thresh_high=0.7, thresh_low=0.3,
                               max_t_tile=None):
    """embeddings [T, H]; agg_a/agg_b [G, T] row-normalized mean membership
    (uniform weight per row, as produced by TreeAggregator('mean')); target [G].
    Returns (loss, predictions[G] int32, {'accuracy': ...})."""
    T, H = embeddings.shape
    G = agg_a.shape[0]
    Gp = _round_up(G, 8)                  # sublane-aligned group count

    # ---- generation-aware tile / VMEM budgeting -----------------------------
    try:
        vmem_cap = int(pltpu.get_tpu_info().vmem_capacity_bytes)
    except Exception:                     # fallback when not queryable
        vmem_cap = 64 << 20               # conservative (v7x-sized) default
    # Leave compiler/internal-scratch headroom (~48 MiB on v7x, ~96 MiB v5e/v6e).
    vmem_budget = (vmem_cap * 3) // 4

    bytes_per_row = 2 * (H + 2 * Gp)      # bf16 emb row + bf16 membership column

    def _vmem_needed(tt):
        in_bytes = 2 * (tt * bytes_per_row + 4 * (3 * Gp))   # double-buffered
        out_bytes = 2 * (4 * Gp + 4 * 2)                     # int32 preds + stats
        scratch = 4 * 2 * Gp * H                             # f32 accumulator
        epilogue = 6 * 4 * Gp * H + 4 * H                    # a/b, 3 products, ones
        return in_bytes + out_bytes + scratch + epilogue

    T_pad = _round_up(T, 128)
    # Target ~2 MiB of bf16 per (embeddings + membership) input tile.
    t_tile = max(128, min(T_pad, _round_up((2 << 20) // bytes_per_row, 128)))
    if max_t_tile is not None:
        t_tile = max(128, min(t_tile, _round_up(int(max_t_tile), 128)))
    while t_tile > 128 and _vmem_needed(t_tile) > vmem_budget:
        t_tile = max(128, _round_up(t_tile // 2, 128))

    # Balance the tile size over T so zero-padding waste is <= ~128 rows/tile
    # (instead of rounding T all the way up to a big fixed tile).
    num_t = -(-T_pad // t_tile)
    t_tile = _round_up(-(-T_pad // num_t), 128)
    T_final = num_t * t_tile

    # ---- build kernel inputs (single fused pad+cast per array) --------------
    pad_g, pad_t = Gp - G, T_final - T
    mask = jnp.concatenate(
        [jnp.pad(agg_a != 0, ((0, pad_g), (0, pad_t))),
         jnp.pad(agg_b != 0, ((0, pad_g), (0, pad_t)))],
        axis=0).astype(jnp.bfloat16)                       # exact 0/1 membership
    emb = jnp.pad(embeddings.astype(jnp.bfloat16), ((0, pad_t), (0, 0)))

    # Uniform per-row mean weight (== 1/count for TreeAggregator('mean')).
    # TODO(synk): non-uniform per-tree weights would need a weighted-membership
    # path (stream the weights instead of a 0/1 mask).
    sa = jnp.zeros((1, Gp), jnp.float32).at[0, :G].set(
        jnp.max(agg_a, axis=1).astype(jnp.float32))
    sb = jnp.zeros((1, Gp), jnp.float32).at[0, :G].set(
        jnp.max(agg_b, axis=1).astype(jnp.float32))
    tgt = jnp.zeros((1, Gp), jnp.float32).at[0, :G].set(
        target.astype(jnp.float32))

    # TODO(synk): for very sparse membership (few trees per text, huge T),
    # replace the dense membership matmul with a PrefetchScalarGridSpec gather
    # of per-group tree rows + segment-sum to avoid O(G*T) mostly-zero traffic.
    # TODO(synk): on v7x, add a leading "parallel" grid axis over H halves (one
    # per TensorCore) with a tiny cross-core combine to use both cores.

    kernel = functools.partial(_entailment_kernel,
                               n_groups=G, n_groups_padded=Gp,
                               thresh_high=float(thresh_high),
                               thresh_low=float(thresh_low))

    vmem_limit = int(min(max(_vmem_needed(t_tile) + (2 << 20), 4 << 20),
                         vmem_budget))

    preds, stats = pl.pallas_call(
        kernel,
        out_shape=(
            jax.ShapeDtypeStruct((1, Gp), jnp.int32),    # predictions (lane-dense)
            jax.ShapeDtypeStruct((1, 2), jnp.float32),   # [loss, accuracy]
        ),
        grid=(num_t,),
        in_specs=[
            # If a trace shows exposed DMA, bump to pipeline_mode=pl.Buffered(3).
            pl.BlockSpec((2 * Gp, t_tile), lambda k: (0, k)),   # 0/1 membership
            pl.BlockSpec((t_tile, H), lambda k: (k, 0)),        # bf16 embeddings
            pl.BlockSpec((1, Gp), lambda k: (0, 0)),            # scale A
            pl.BlockSpec((1, Gp), lambda k: (0, 0)),            # scale B
            pl.BlockSpec((1, Gp), lambda k: (0, 0)),            # targets
        ],
        out_specs=(
            pl.BlockSpec((1, Gp), lambda k: (0, 0)),
            pl.BlockSpec((1, 2), lambda k: (0, 0)),
        ),
        scratch_shapes=[pltpu.VMEM((2 * Gp, H), jnp.float32)],
        compiler_params=pltpu.CompilerParams(
            dimension_semantics=("arbitrary",),     # T is a reduction axis
            vmem_limit_bytes=vmem_limit),
    )(mask, emb, sa, sb, tgt)

    return stats[0, 0], preds[0, :G], {"accuracy": stats[0, 1]}


# --------------------------- test / reference harness ------------------------

def _reference(embeddings, agg_a, agg_b, target, thresh_high, thresh_low):
    # The kernel streams bf16 activations; the reference consumes the same
    # bf16-rounded embeddings but reduces in f32 at highest precision.
    emb = embeddings.astype(jnp.bfloat16).astype(jnp.float32)
    a = jnp.dot(agg_a, emb, precision=lax.Precision.HIGHEST)
    b = jnp.dot(agg_b, emb, precision=lax.Precision.HIGHEST)
    eps = 1e-8
    sim = jnp.sum(a * b, axis=1) / (
        jnp.maximum(jnp.linalg.norm(a, axis=1), eps)
        * jnp.maximum(jnp.linalg.norm(b, axis=1), eps))
    preds = jnp.where(sim > thresh_high, 1,
                      jnp.where(sim < thresh_low, -1, 0)).astype(jnp.int32)
    loss = jnp.mean((sim - target) ** 2)
    acc = jnp.mean((preds == target.astype(jnp.int32)).astype(jnp.float32))
    return loss, preds, acc


def _make_case(key, n_groups, trees_per_text, hidden):
    n_texts = 2 * n_groups
    n_trees = n_texts * trees_per_text
    embeddings = jax.random.normal(key, (n_trees, hidden), dtype=jnp.float32)
    # TreeAggregator('mean'): membership matrix, rows normalized by tree count.
    text_ids = jnp.repeat(jnp.arange(n_texts), trees_per_text)
    membership = (jnp.arange(n_texts)[:, None] == text_ids[None, :]
                  ).astype(jnp.float32) / trees_per_text
    agg_a = membership[0::2]   # text A of each pair  [G, T]
    agg_b = membership[1::2]   # text B of each pair  [G, T]
    return embeddings, agg_a, agg_b


def _run_and_check(embeddings, agg_a, agg_b, target, thresh_high, thresh_low,
                   max_t_tile=None):
    loss, preds, metrics = text_level_entailment_loss(
        embeddings, agg_a, agg_b, target,
        thresh_high=thresh_high, thresh_low=thresh_low, max_t_tile=max_t_tile)
    jax.block_until_ready((loss, preds, metrics["accuracy"]))

    ref_loss, ref_preds, ref_acc = _reference(
        embeddings, agg_a, agg_b, target, thresh_high, thresh_low)
    assert jnp.allclose(loss, ref_loss, atol=1e-4, rtol=1e-4), (loss, ref_loss)
    assert jnp.array_equal(preds, ref_preds), (preds, ref_preds)
    assert jnp.allclose(metrics["accuracy"], ref_acc, atol=1e-6), (
        metrics["accuracy"], ref_acc)


if __name__ == "__main__":
    key = jax.random.PRNGKey(0)
    k1, k2, k3 = jax.random.split(key, 3)

    thresh_high, thresh_low = 0.3, -0.3

    # Case 1: tiny (single T tile): 4 pairs, 2 trees/text, hidden=128.
    emb1, agg_a1, agg_b1 = _make_case(k1, n_groups=4, trees_per_text=2, hidden=128)
    target1 = jnp.array([-1.0, 0.0, 1.0, 1.0], dtype=jnp.float32)
    _run_and_check(emb1, agg_a1, agg_b1, target1, thresh_high, thresh_low)

    # Case 2: multi-tile reduction over T (640 trees, forced 256-row tiles
    # -> 3 grid steps with balanced tiling).
    emb2, agg_a2, agg_b2 = _make_case(k2, n_groups=4, trees_per_text=80, hidden=128)
    target2 = jnp.array([1.0, -1.0, 0.0, 1.0], dtype=jnp.float32)
    _run_and_check(emb2, agg_a2, agg_b2, target2, thresh_high, thresh_low,
                   max_t_tile=256)

    # Case 3: odd group count (pad lanes) and non-128 hidden handled as full dim.
    emb3, agg_a3, agg_b3 = _make_case(k3, n_groups=5, trees_per_text=3, hidden=256)
    target3 = jnp.array([1.0, 0.0, -1.0, 1.0, 0.0], dtype=jnp.float32)
    _run_and_check(emb3, agg_a3, agg_b3, target3, thresh_high, thresh_low)

    print("KERNEL_OK")
</pallas_src>

<mosaic_0001>
module attributes {stable_mosaic.version = 11 : i64} {
  func.func @_entailment_kernel(%arg0: i32, %arg1: memref<16x128xbf16, #tpu.memory_space<vmem>>, %arg2: memref<128x128xbf16, #tpu.memory_space<vmem>>, %arg3: memref<1x8xf32, #tpu.memory_space<vmem>>, %arg4: memref<1x8xf32, #tpu.memory_space<vmem>>, %arg5: memref<1x8xf32, #tpu.memory_space<vmem>>, %arg6: memref<1x8xi32, #tpu.memory_space<vmem>>, %arg7: memref<1x2xf32, #tpu.memory_space<vmem>>, %arg8: memref<16x128xf32, #tpu.memory_space<vmem>>) attributes {dimension_semantics = [#tpu.dimension_semantics<arbitrary>], iteration_bounds = array<i64: 1>, scalar_prefetch = 0 : i64, scratch_operands = 1 : i64, tpu.core_type = #tpu.core_type<tc>, window_params = [{transform_indices = @transform_0, window_bounds = array<i64: 16, 128>}, {transform_indices = @transform_1, window_bounds = array<i64: 128, 128>}, {pipeline_mode = #tpu.pipeline_mode<synchronous>, transform_indices = @transform_2, window_bounds = array<i64: 1, 8>}, {pipeline_mode = #tpu.pipeline_mode<synchronous>, transform_indices = @transform_3, window_bounds = array<i64: 1, 8>}, {pipeline_mode = #tpu.pipeline_mode<synchronous>, transform_indices = @transform_4, window_bounds = array<i64: 1, 8>}, {pipeline_mode = #tpu.pipeline_mode<synchronous>, transform_indices = @transform_5, window_bounds = array<i64: 1, 8>}, {pipeline_mode = #tpu.pipeline_mode<synchronous>, transform_indices = @transform_6, window_bounds = array<i64: 1, 2>}]} {
    %c0_i32 = arith.constant 0 : i32
    %0 = arith.cmpi eq, %arg0, %c0_i32 : i32
    %1 = arith.extui %0 : i1 to i32
    %c0_i32_0 = arith.constant 0 : i32
    %2 = arith.cmpi ne, %1, %c0_i32_0 : i32
    scf.if %2 {
      %cst_10 = arith.constant 0.000000e+00 : f32
      %12 = vector.broadcast %cst_10 : f32 to vector<16x128xf32>
      %c0_11 = arith.constant 0 : index
      %c0_12 = arith.constant 0 : index
      %13 = vector.load %arg8[%c0_11, %c0_12] : memref<16x128xf32, #tpu.memory_space<vmem>>, vector<16x128xf32>
      tpu.vector_store %arg8[%c0_11, %c0_12], %12 {strides = array<i32>} : memref<16x128xf32, #tpu.memory_space<vmem>>, vector<16x128xf32>,
    } else {
    }
    %c0 = arith.constant 0 : index
    %c0_1 = arith.constant 0 : index
    %3 = vector.load %arg8[%c0, %c0_1] : memref<16x128xf32, #tpu.memory_space<vmem>>, vector<16x128xf32>
    %c0_2 = arith.constant 0 : index
    %c0_3 = arith.constant 0 : index
    %4 = vector.load %arg1[%c0_2, %c0_3] : memref<16x128xbf16, #tpu.memory_space<vmem>>, vector<16x128xbf16>
    %c0_4 = arith.constant 0 : index
    %c0_5 = arith.constant 0 : index
    %5 = vector.load %arg2[%c0_4, %c0_5] : memref<128x128xbf16, #tpu.memory_space<vmem>>, vector<128x128xbf16>
    %cst = arith.constant dense<0.000000e+00> : vector<16x128xf32>
    %6 = tpu.matmul %4, %5, %cst {dimension_numbers = #tpu.dot_dimension_numbers<[1], [0], [0], [1], [0, 0, 1, 1], [], []>} : vector<16x128xbf16>, vector<128x128xbf16>, vector<16x128xf32> -> vector<16x128xf32>
    %7 = arith.addf %3, %6 : vector<16x128xf32>
    %c0_6 = arith.constant 0 : index
    %c0_7 = arith.constant 0 : index
    %8 = vector.load %arg8[%c0_6, %c0_7] : memref<16x128xf32, #tpu.memory_space<vmem>>, vector<16x128xf32>
    tpu.vector_store %arg8[%c0_6, %c0_7], %7 {strides = array<i32>} : memref<16x128xf32, #tpu.memory_space<vmem>>, vector<16x128xf32>,
    %c0_i32_8 = arith.constant 0 : i32
    %9 = arith.cmpi eq, %arg0, %c0_i32_8 : i32
    %10 = arith.extui %9 : i1 to i32
    %c0_i32_9 = arith.constant 0 : i32
    %11 = arith.cmpi ne, %10, %c0_i32_9 : i32
    scf.if %11 {
      %c0_10 = arith.constant 0 : index
      %c0_11 = arith.constant 0 : index
      %12 = vector.load %arg8[%c0_10, %c0_11] : memref<16x128xf32, #tpu.memory_space<vmem>>, vector<8x128xf32>
      %c8 = arith.constant 8 : index
      %c0_12 = arith.constant 0 : index
      %13 = vector.load %arg8[%c8, %c0_12] : memref<16x128xf32, #tpu.memory_space<vmem>>, vector<8x128xf32>
      %cst_13 = arith.constant 1.000000e+00 : f32
      %14 = vector.broadcast %cst_13 : f32 to vector<1x128xf32>
      %15 = arith.mulf %12, %13 : vector<8x128xf32>
      %cst_14 = arith.constant dense<0.000000e+00> : vector<1x8xf32>
      %16 = tpu.matmul %14, %15, %cst_14 {dimension_numbers = #tpu.dot_dimension_numbers<[1], [1], [0], [0], [0, 0, 1, 0], [], []>} : vector<1x128xf32>, vector<8x128xf32>, vector<1x8xf32> -> vector<1x8xf32>
      %17 = arith.mulf %12, %12 : vector<8x128xf32>
      %cst_15 = arith.constant dense<0.000000e+00> : vector<1x8xf32>
      %18 = tpu.matmul %14, %17, %cst_15 {dimension_numbers = #tpu.dot_dimension_numbers<[1], [1], [0], [0], [0, 0, 1, 0], [], []>} : vector<1x128xf32>, vector<8x128xf32>, vector<1x8xf32> -> vector<1x8xf32>
      %19 = arith.mulf %13, %13 : vector<8x128xf32>
      %cst_16 = arith.constant dense<0.000000e+00> : vector<1x8xf32>
      %20 = tpu.matmul %14, %19, %cst_16 {dimension_numbers = #tpu.dot_dimension_numbers<[1], [1], [0], [0], [0, 0, 1, 0], [], []>} : vector<1x128xf32>, vector<8x128xf32>, vector<1x8xf32> -> vector<1x8xf32>
      %c0_17 = arith.constant 0 : index
      %c0_18 = arith.constant 0 : index
      %21 = vector.load %arg3[%c0_17, %c0_18] : memref<1x8xf32, #tpu.memory_space<vmem>>, vector<1x8xf32>
      %c0_19 = arith.constant 0 : index
      %c0_20 = arith.constant 0 : index
      %22 = vector.load %arg4[%c0_19, %c0_20] : memref<1x8xf32, #tpu.memory_space<vmem>>, vector<1x8xf32>
      %23 = arith.mulf %21, %22 : vector<1x8xf32>
      %24 = arith.mulf %16, %23 : vector<1x8xf32>
      %25 = arith.mulf %21, %21 : vector<1x8xf32>
      %26 = arith.mulf %18, %25 : vector<1x8xf32>
      %27 = arith.mulf %22, %22 : vector<1x8xf32>
      %28 = arith.mulf %20, %27 : vector<1x8xf32>
      %cst_21 = arith.constant 1.000000e-16 : f32
      %29 = vector.broadcast %cst_21 : f32 to vector<1x8xf32>
      %30 = arith.maximumf %26, %29 : vector<1x8xf32>
      %31 = math.rsqrt %30 : vector<1x8xf32>
      %32 = arith.mulf %24, %31 : vector<1x8xf32>
      %cst_22 = arith.constant 1.000000e-16 : f32
      %33 = vector.broadcast %cst_22 : f32 to vector<1x8xf32>
      %34 = arith.maximumf %28, %33 : vector<1x8xf32>
      %35 = math.rsqrt %34 : vector<1x8xf32>
      %36 = arith.mulf %32, %35 : vector<1x8xf32>
      %cst_23 = arith.constant 3.000000e-01 : f32
      %37 = vector.broadcast %cst_23 : f32 to vector<1x8xf32>
      %38 = arith.cmpf ogt, %36, %37 : vector<1x8xf32>
      %cst_24 = arith.constant -3.000000e-01 : f32
      %39 = vector.broadcast %cst_24 : f32 to vector<1x8xf32>
      %40 = arith.cmpf olt, %36, %39 : vector<1x8xf32>
      %c-1_i32 = arith.constant -1 : i32
      %c0_i32_25 = arith.constant 0 : i32
      %41 = vector.broadcast %c-1_i32 : i32 to vector<1x8xi32>
      %42 = vector.broadcast %c0_i32_25 : i32 to vector<1x8xi32>
      %43 = arith.select %40, %41, %42 : vector<1x8xi1>, vector<1x8xi32>
      %c1_i32 = arith.constant 1 : i32
      %44 = vector.broadcast %c1_i32 : i32 to vector<1x8xi32>
      %45 = arith.select %38, %44, %43 : vector<1x8xi1>, vector<1x8xi32>
      %c0_26 = arith.constant 0 : index
      %c0_27 = arith.constant 0 : index
      %46 = vector.load %arg6[%c0_26, %c0_27] : memref<1x8xi32, #tpu.memory_space<vmem>>, vector<1x8xi32>
      tpu.vector_store %arg6[%c0_26, %c0_27], %45 {strides = array<i32>} : memref<1x8xi32, #tpu.memory_space<vmem>>, vector<1x8xi32>,
      %c0_28 = arith.constant 0 : index
      %c0_29 = arith.constant 0 : index
      %47 = vector.load %arg5[%c0_28, %c0_29] : memref<1x8xf32, #tpu.memory_space<vmem>>, vector<1x8xf32>
      %48 = tpu.iota {dimensions = array<i32: 1>} : vector<1x8xi32>
      %c4_i32 = arith.constant 4 : i32
      %49 = vector.broadcast %c4_i32 : i32 to vector<1x8xi32>
      %50 = arith.cmpi slt, %48, %49 : vector<1x8xi32>
      %51 = arith.extui %50 : vector<1x8xi1> to vector<1x8xi32>
      %52 = arith.sitofp %51 : vector<1x8xi32> to vector<1x8xf32>
      %53 = arith.subf %36, %47 : vector<1x8xf32>
      %54 = arith.mulf %53, %52 : vector<1x8xf32>
      %55 = arith.mulf %54, %54 : vector<1x8xf32>
      %56 = vector.shape_cast %55 : vector<1x8xf32> to vector<1x1x8xf32>
      %cst_30 = arith.constant dense<0.000000e+00> : vector<1xf32>
      %57 = vector.multi_reduction <add>, %56, %cst_30 [1, 2] : vector<1x1x8xf32> to vector<1xf32>
      %58 = vector.shape_cast %57 : vector<1xf32> to vector<1x1x1xf32>
      %59 = vector.extract %58[0, 0, 0] : f32 from vector<1x1x1xf32>
      %cst_31 = arith.constant 2.500000e-01 : f32
      %60 = arith.mulf %59, %cst_31 : f32
      %61 = arith.fptosi %47 : vector<1x8xf32> to vector<1x8xi32>
      %62 = arith.cmpi eq, %45, %61 : vector<1x8xi32>
      %63 = arith.extui %62 : vector<1x8xi1> to vector<1x8xi32>
      %64 = arith.sitofp %63 : vector<1x8xi32> to vector<1x8xf32>
      %65 = arith.mulf %64, %52 : vector<1x8xf32>
      %66 = vector.shape_cast %65 : vector<1x8xf32> to vector<1x1x8xf32>
      %cst_32 = arith.constant dense<0.000000e+00> : vector<1xf32>
      %67 = vector.multi_reduction <add>, %66, %cst_32 [1, 2] : vector<1x1x8xf32> to vector<1xf32>
      %68 = vector.shape_cast %67 : vector<1xf32> to vector<1x1x1xf32>
      %69 = vector.extract %68[0, 0, 0] : f32 from vector<1x1x1xf32>
      %cst_33 = arith.constant 2.500000e-01 : f32
      %70 = arith.mulf %69, %cst_33 : f32
      %71 = vector.broadcast %60 : f32 to vector<1x1xf32>
      %c0_34 = arith.constant 0 : index
      %c0_35 = arith.constant 0 : index
      %72 = vector.load %arg7[%c0_34, %c0_35] : memref<1x2xf32, #tpu.memory_space<vmem>>, vector<1x1xf32>
      tpu.vector_store %arg7[%c0_34, %c0_35], %71 {strides = array<i32>} : memref<1x2xf32, #tpu.memory_space<vmem>>, vector<1x1xf32>,
      %73 = vector.broadcast %70 : f32 to vector<1x1xf32>
      %c0_36 = arith.constant 0 : index
      %c1 = arith.constant 1 : index
      %74 = vector.load %arg7[%c0_36, %c1] : memref<1x2xf32, #tpu.memory_space<vmem>>, vector<1x1xf32>
      tpu.vector_store %arg7[%c0_36, %c1], %73 {strides = array<i32>} : memref<1x2xf32, #tpu.memory_space<vmem>>, vector<1x1xf32>,
    } else {
    }
    return
  }
  func.func @transform_0(%arg0: i32) -> (i32, i32) {
    %c0_i32 = arith.constant 0 : i32
    %c0_i32_0 = arith.constant 0 : i32
    return %c0_i32, %arg0 : i32, i32
  }
  func.func @transform_1(%arg0: i32) -> (i32, i32) {
    %c0_i32 = arith.constant 0 : i32
    %c0_i32_0 = arith.constant 0 : i32
    return %arg0, %c0_i32 : i32, i32
  }
  func.func @transform_2(%arg0: i32) -> (i32, i32) {
    %c0_i32 = arith.constant 0 : i32
    %c0_i32_0 = arith.constant 0 : i32
    %c0_i32_1 = arith.constant 0 : i32
    return %c0_i32, %c0_i32_0 : i32, i32
  }
  func.func @transform_3(%arg0: i32) -> (i32, i32) {
    %c0_i32 = arith.constant 0 : i32
    %c0_i32_0 = arith.constant 0 : i32
    %c0_i32_1 = arith.constant 0 : i32
    return %c0_i32, %c0_i32_0 : i32, i32
  }
  func.func @transform_4(%arg0: i32) -> (i32, i32) {
    %c0_i32 = arith.constant 0 : i32
    %c0_i32_0 = arith.constant 0 : i32
    %c0_i32_1 = arith.constant 0 : i32
    return %c0_i32, %c0_i32_0 : i32, i32
  }
  func.func @transform_5(%arg0: i32) -> (i32, i32) {
    %c0_i32 = arith.constant 0 : i32
    %c0_i32_0 = arith.constant 0 : i32
    %c0_i32_1 = arith.constant 0 : i32
    return %c0_i32, %c0_i32_0 : i32, i32
  }
  func.func @transform_6(%arg0: i32) -> (i32, i32) {
    %c0_i32 = arith.constant 0 : i32
    %c0_i32_0 = arith.constant 0 : i32
    %c0_i32_1 = arith.constant 0 : i32
    return %c0_i32, %c0_i32_0 : i32, i32
  }
}

</mosaic_0001>

<llo_original>
// kernel: tpu_custom_call.1
$region0: #{tpu_custom_call.1}
  #allocation0 [shape = 'u32[]', space=smem, size = 0x4, offset = 0x4, fixed_abs, tag = 'smem constant byte address 0x4 - core index']
  #allocation1 [shape = 'u32[144,128]{1,0:T(1,128)}', space=vmem, size = 0x12000, scoped, tag = 'internal scratch']
  #allocation2 [shape = 'f32[16,128]{1,0:T(8,128)}', space=vmem, size = 0x2000, scoped, tag = 'scratch operand']
  %s0 = inlined_call_operand.hbm [shape: bf16[16,128], index: 0, kind: input, shape index: {}]
  %s1 = inlined_call_operand.hbm [shape: bf16[128,128], index: 1, kind: input, shape index: {}]
  %s2 = inlined_call_operand.vmem [shape: f32[1,8], index: 2, kind: input, shape index: {}]
  %s3 = inlined_call_operand.vmem [shape: f32[1,8], index: 3, kind: input, shape index: {}]
  %s4 = inlined_call_operand.vmem [shape: f32[1,8], index: 4, kind: input, shape index: {}]
  %s5 = inlined_call_operand.hbm [shape: s32[1,8], index: 5, kind: output, shape index: {0}]
  %s6 = inlined_call_operand.hbm [shape: f32[1,2], index: 6, kind: output, shape index: {1}]
  %7 = xla_tuple %s5, %s6
  %s8 = sld [smem:[#allocation0]]
  $region54: #{tpu_custom_call.1} parent=0
    _
  %s10 = ssub.s32 1, %s8
  %s11 = scalar_select 0, %s10, %s8
  $region1: #{tpu_custom_call.1} parent=0
    #allocation3 [shape = 'u8[4096]{0}', space=vmem, size = 0x1000, scoped, tag = 'input window, operand 0, single buffered']
    #allocation4 [shape = 's32[1]{0}', space=sflag, size = 0x4, scoped, tag = 'scoped memory for tpu_custom_call.1']
    #allocation5 [shape = 's32[1]{0}', space=sflag, size = 0x4, scoped, tag = 'scoped memory for tpu_custom_call.1']
    #allocation6 [shape = 'u8[32768]{0}', space=vmem, size = 0x8000, scoped, tag = 'input window, operand 1, single buffered']
    #allocation7 [shape = 's32[1]{0}', space=sflag, size = 0x4, scoped, tag = 'scoped memory for tpu_custom_call.1']
    #allocation8 [shape = 'u8[512]{0}', space=vmem, size = 0x400, scoped, tag = 'output window, operand 0, single buffered']
    #allocation9 [shape = 'u8[512]{0}', space=vmem, size = 0x400, scoped, tag = 'output window, operand 1, single buffered']
    #allocation10 [shape = 's32[1]{0}', space=sflag, size = 0x4, scoped, tag = 'scoped memory for tpu_custom_call.1']
    %12 = vsyncpa [#allocation4], 0
    %13 = vsyncpa [#allocation7], 0
    %14 = vsyncpa [#allocation5], 0
    %15 = vsyncpa [#allocation10], 0
    // Predicated region
    $region2: #{tpu_custom_call.1} parent=1 // pred_check
      _
    $region3: #{tpu_custom_call.1} parent=1 // pred_check_branch
      %17 = sbr.rel (0) target = $region5
    $region4: #{tpu_custom_call.1} parent=1 // pred_region
      %s19 = ssub.s32 128, 128
      %20 = vsyncadd [#allocation4], %s19
      %s21 = sshll.u32 [#allocation3], 4
      %s22 = int_to_ptr.vmem [resolvable:$true] %s21
      %27 = dma.hbm_to_vmem [thread:$0]  %s0, 128, %s22, [#allocation4], 64, 64, 4
    $region5: #{tpu_custom_call.1} parent=1 // pred_fallthru
      _
    // Predicated region
    $region6: #{tpu_custom_call.1} parent=1 // pred_check
      _
    $region7: #{tpu_custom_call.1} parent=1 // pred_check_branch
      %29 = sbr.rel (0) target = $region9
    $region8: #{tpu_custom_call.1} parent=1 // pred_region
      %s31 = ssub.s32 1024, 1024
      %32 = vsyncadd [#allocation7], %s31
      %s33 = sshll.u32 [#allocation6], 4
      %s34 = int_to_ptr.vmem [resolvable:$true] %s33
      %39 = dma.hbm_to_vmem [thread:$0]  %s1, 1024, %s34, [#allocation7], 64, 64, 4
    $region9: #{tpu_custom_call.1} parent=1 // pred_fallthru
      _
    // Predicated region
    $region10: #{tpu_custom_call.1} parent=1 // pred_check
      _
    $region11: #{tpu_custom_call.1} parent=1 // pred_check_branch
      %41 = sbr.rel (0) target = $region13
    $region12: #{tpu_custom_call.1} parent=1 // pred_region
      _
    $region13: #{tpu_custom_call.1} parent=1 // pred_fallthru
      _
    // Predicated region
    $region14: #{tpu_custom_call.1} parent=1 // pred_check
      _
    $region15: #{tpu_custom_call.1} parent=1 // pred_check_branch
      %43 = sbr.rel (0) target = $region17
    $region16: #{tpu_custom_call.1} parent=1 // pred_region
      _
    $region17: #{tpu_custom_call.1} parent=1 // pred_fallthru
      _
    // Predicated region
    $region18: #{tpu_custom_call.1} parent=1 // pred_check
      _
    $region19: #{tpu_custom_call.1} parent=1 // pred_check_branch
      %45 = sbr.rel (0) target = $region21
    $region20: #{tpu_custom_call.1} parent=1 // pred_region
      _
    $region21: #{tpu_custom_call.1} parent=1 // pred_fallthru
      _
    // Predicated region
    $region22: #{tpu_custom_call.1} parent=1 // pred_check
      _
    $region23: #{tpu_custom_call.1} parent=1 // pred_check_branch
      %47 = sbr.rel (0) target = $region25
    $region24: #{tpu_custom_call.1} parent=1 // pred_region
      %48 = dma.done [#allocation4], 128
    $region25: #{tpu_custom_call.1} parent=1 // pred_fallthru
      _
    // Predicated region
    $region26: #{tpu_custom_call.1} parent=1 // pred_check
      _
    $region27: #{tpu_custom_call.1} parent=1 // pred_check_branch
      %50 = sbr.rel (0) target = $region29
    $region28: #{tpu_custom_call.1} parent=1 // pred_region
      %51 = dma.done [#allocation7], 1024
    $region29: #{tpu_custom_call.1} parent=1 // pred_fallthru
      _
    %p53 = scmp.eq.s32.totalorder 0, 0
    // Predicated region
    $region30: #{tpu_custom_call.1} parent=1 // pred_check
      %p54 = pneg %p53
    $region31: #{tpu_custom_call.1} parent=1 // pred_check_branch
      %56 = sbr.rel (%p54) target = $region33
    $region32: #{tpu_custom_call.1} parent=1 // pred_region
      %57 = vst [vmem:[#allocation2] sm:$0xff] 0.0
      %58 = vst [vmem:[#allocation2 + $0x8] sm:$0xff] 0.0
    $region33: #{tpu_custom_call.1} parent=1 // pred_fallthru
      _
    %v59 = vld [vmem:[#allocation2] sm:$0xff]
    %v60 = vld [vmem:[#allocation2 + $0x8] sm:$0xff]
    %v61 = vld [vmem:[#allocation3] sm:$0xf]
    %v62 = vld [vmem:[#allocation3 + $0x4] sm:$0xf]
    %v63 = vld [vmem:[#allocation6] sm:$0xf]
    %v64 = vld [vmem:[#allocation6 + $0x4] sm:$0xf]
    %v65 = vld [vmem:[#allocation6 + $0x8] sm:$0xf]
    %v66 = vld [vmem:[#allocation6 + $0xc] sm:$0xf]
    %v67 = vld [vmem:[#allocation6 + $0x10] sm:$0xf]
    %v68 = vld [vmem:[#allocation6 + $0x14] sm:$0xf]
    %v69 = vld [vmem:[#allocation6 + $0x18] sm:$0xf]
    %v70 = vld [vmem:[#allocation6 + $0x1c] sm:$0xf]
    %v71 = vld [vmem:[#allocation6 + $0x20] sm:$0xf]
    %v72 = vld [vmem:[#allocation6 + $0x24] sm:$0xf]
    %v73 = vld [vmem:[#allocation6 + $0x28] sm:$0xf]
    %v74 = vld [vmem:[#allocation6 + $0x2c] sm:$0xf]
    %v75 = vld [vmem:[#allocation6 + $0x30] sm:$0xf]
    %v76 = vld [vmem:[#allocation6 + $0x34] sm:$0xf]
    %v77 = vld [vmem:[#allocation6 + $0x38] sm:$0xf]
    %v78 = vld [vmem:[#allocation6 + $0x3c] sm:$0xf]
    %v81 = vunpack.c.l.b16 %v61
    %v82 = vunpack.c.l.b16 %v62
    %v83 = vpack.c.b16 %v82, %v81
    %v101 = vunpack.c.l.b16 %v63
    %v102 = vunpack.c.l.b16 %v64
    %v103 = vunpack.c.l.b16 %v65
    %v104 = vunpack.c.l.b16 %v66
    %v105 = vunpack.c.l.b16 %v67
    %v106 = vunpack.c.l.b16 %v68
    %v107 = vunpack.c.l.b16 %v69
    %v108 = vunpack.c.l.b16 %v70
    %v109 = vunpack.c.l.b16 %v71
    %v110 = vunpack.c.l.b16 %v72
    %v111 = vunpack.c.l.b16 %v73
    %v112 = vunpack.c.l.b16 %v74
    %v113 = vunpack.c.l.b16 %v75
    %v114 = vunpack.c.l.b16 %v76
    %v115 = vunpack.c.l.b16 %v77
    %v116 = vunpack.c.l.b16 %v78
    %v117 = vpack.c.b16 %v102, %v101
    %v118 = vpack.c.b16 %v104, %v103
    %v119 = vpack.c.b16 %v106, %v105
    %v120 = vpack.c.b16 %v108, %v107
    %v121 = vpack.c.b16 %v110, %v109
    %v122 = vpack.c.b16 %v112, %v111
    %v123 = vpack.c.b16 %v114, %v113
    %v124 = vpack.c.b16 %v116, %v115
    %133 = vmatprep.subr.bf16.mxu0 0
    %134 = vmatpush1.bf16.msra.mxu0 %v117
    %135 = vmatprep.subr.bf16.mxu0 0
    %136 = vmatpush1.bf16.msra.mxu0 %v118
    %137 = vmatprep.subr.bf16.mxu0 0
    %138 = vmatpush1.bf16.msra.mxu0 %v119
    %139 = vmatprep.subr.bf16.mxu0 0
    %140 = vmatpush1.bf16.msra.mxu0 %v120
    %141 = vmatprep.subr.bf16.mxu0 0
    %142 = vmatpush1.bf16.msra.mxu0 %v121
    %143 = vmatprep.subr.bf16.mxu0 0
    %144 = vmatpush1.bf16.msra.mxu0 %v122
    %145 = vmatprep.subr.bf16.mxu0 0
    %146 = vmatpush1.bf16.msra.mxu0 %v123
    %147 = vmatprep.subr.bf16.mxu0 0
    %148 = vmatpush1.bf16.msra.mxu0 %v124
    %149 = vmatprep.subr.bf16.mxu0 0
    %150 = vmatpush1.bf16.msra.mxu0 0
    %151 = vmatprep.subr.bf16.mxu0 0
    %152 = vmatpush1.bf16.msra.mxu0 0
    %153 = vmatprep.subr.bf16.mxu0 0
    %154 = vmatpush1.bf16.msra.mxu0 0
    %155 = vmatprep.subr.bf16.mxu0 0
    %156 = vmatpush1.bf16.msra.mxu0 0
    %157 = vmatprep.subr.bf16.mxu0 0
    %158 = vmatpush1.bf16.msra.mxu0 0
    %159 = vmatprep.subr.bf16.mxu0 0
    %160 = vmatpush1.bf16.msra.mxu0 0
    %161 = vmatprep.subr.bf16.mxu0 0
    %162 = vmatpush1.bf16.msra.mxu0 0
    %163 = vmatprep.subr.bf16.mxu0 0
    %164 = vmatpush1.bf16.msra.mxu0 0
    %165 = vmatprep.mubr.bf16.mxu0 0
    %166 = vmatmul.mubr.bf16.gmra.mrb[0].mxu0 %v83
    %v167 = vpop.f32.mrb[0].mxu0
    %v168 = vadd.f32 0.0, %v167
    %v169 = vpop.f32.mrb[0].mxu0
    %v170 = vpop.f32.mrb[0].mxu0
    %v171 = vadd.f32 0.0, %v170
    %v172 = vpop.f32.mrb[0].mxu0
    %173 = vdwg.mxu0
    %v174 = vadd.f32 %v59, %v168
    %v175 = vadd.f32 %v60, %v171
    %176 = vst [vmem:[#allocation2] sm:$0xff] %v174
    %177 = vst [vmem:[#allocation2 + $0x8] sm:$0xff] %v175
    // Predicated region
    $region34: #{tpu_custom_call.1} parent=1 // pred_check
      %p178 = pneg %p53
    $region35: #{tpu_custom_call.1} parent=1 // pred_check_branch
      %180 = sbr.rel (%p178) target = $region37
    $region36: #{tpu_custom_call.1} parent=1 // pred_region
      %v181 = vld [vmem:[#allocation2] sm:$0xff]
      %v182 = vld [vmem:[#allocation2 + $0x8] sm:$0xff]
      %v183 = vmul.f32 %v181, %v182
      %184 = vmatprep.subr.mxu0 0.0
      %185 = vmatpush1.xpose.msra.mxu0 %v183
      %186 = vmatprep.subr.mxu0 0.0
      %187 = vmatpush1.xpose.msra.mxu0 0.0
      %188 = vmatprep.subr.mxu0 0.0
      %189 = vmatpush1.xpose.msra.mxu0 0.0
      %190 = vmatprep.subr.mxu0 0.0
      %191 = vmatpush1.xpose.msra.mxu0 0.0
      %192 = vmatprep.subr.mxu0 0.0
      %193 = vmatpush1.xpose.msra.mxu0 0.0
      %194 = vmatprep.subr.mxu0 0.0
      %195 = vmatpush1.xpose.msra.mxu0 0.0
      %196 = vmatprep.subr.mxu0 0.0
      %197 = vmatpush1.xpose.msra.mxu0 0.0
      %198 = vmatprep.subr.mxu0 0.0
      %199 = vmatpush1.xpose.msra.mxu0 0.0
      %200 = vmatprep.subr.mxu0 0.0
      %201 = vmatpush1.xpose.msra.mxu0 0.0
      %202 = vmatprep.subr.mxu0 0.0
      %203 = vmatpush1.xpose.msra.mxu0 0.0
      %204 = vmatprep.subr.mxu0 0.0
      %205 = vmatpush1.xpose.msra.mxu0 0.0
      %206 = vmatprep.subr.mxu0 0.0
      %207 = vmatpush1.xpose.msra.mxu0 0.0
      %208 = vmatprep.subr.mxu0 0.0
      %209 = vmatpush1.xpose.msra.mxu0 0.0
      %210 = vmatprep.subr.mxu0 0.0
      %211 = vmatpush1.xpose.msra.mxu0 0.0
      %212 = vmatprep.subr.mxu0 0.0
      %213 = vmatpush1.xpose.msra.mxu0 0.0
      %214 = vmatprep.subr.mxu0 0.0
      %215 = vmatpush1.xpose.msra.mxu0 0.0
      %216 = vmatprep.subr.mxu0 0.0
      %217 = vmatpush1.xpose.msra.mxu0 0.0
      %218 = vmatprep.subr.mxu0 0.0
      %219 = vmatpush1.xpose.msra.mxu0 0.0
      %220 = vmatprep.subr.mxu0 0.0
      %221 = vmatpush1.xpose.msra.mxu0 0.0
      %222 = vmatprep.subr.mxu0 0.0
      %223 = vmatpush1.xpose.msra.mxu0 0.0
      %224 = vmatprep.subr.mxu0 0.0
      %225 = vmatpush1.xpose.msra.mxu0 0.0
      %226 = vmatprep.subr.mxu0 0.0
      %227 = vmatpush1.xpose.msra.mxu0 0.0
      %228 = vmatprep.subr.mxu0 0.0
      %229 = vmatpush1.xpose.msra.mxu0 0.0
      %230 = vmatprep.subr.mxu0 0.0
      %231 = vmatpush1.xpose.msra.mxu0 0.0
      %232 = vmatprep.subr.mxu0 0.0
      %233 = vmatpush1.xpose.msra.mxu0 0.0
      %234 = vmatprep.subr.mxu0 0.0
      %235 = vmatpush1.xpose.msra.mxu0 0.0
      %236 = vmatprep.subr.mxu0 0.0
      %237 = vmatpush1.xpose.msra.mxu0 0.0
      %238 = vmatprep.subr.mxu0 0.0
      %239 = vmatpush1.xpose.msra.mxu0 0.0
      %240 = vmatprep.subr.mxu0 0.0
      %241 = vmatpush1.xpose.msra.mxu0 0.0
      %242 = vmatprep.subr.mxu0 0.0
      %243 = vmatpush1.xpose.msra.mxu0 0.0
      %244 = vmatprep.subr.mxu0 0.0
      %245 = vmatpush1.xpose.msra.mxu0 0.0
      %246 = vmatprep.subr.mxu0 0.0
      %247 = vmatpush1.xpose.msra.mxu0 0.0
      %248 = vmatprep.mubr.f32.mxu0 0.0
      %249 = vmatmul.mubr.f32.gmra.mrb[0].mxu0 1.0
      %v250 = vpop.f32.mrb[0].mxu0
      %v251 = vadd.f32 0.0, %v250
      %v252 = vpop.f32.mrb[0].mxu0
      %253 = vdwg.mxu0
      %v254 = vmul.f32 %v181, %v181
      %255 = vmatprep.subr.mxu0 0.0
      %256 = vmatpush1.xpose.msra.mxu0 %v254
      %257 = vmatprep.subr.mxu0 0.0
      %258 = vmatpush1.xpose.msra.mxu0 0.0
      %259 = vmatprep.subr.mxu0 0.0
      %260 = vmatpush1.xpose.msra.mxu0 0.0
      %261 = vmatprep.subr.mxu0 0.0
      %262 = vmatpush1.xpose.msra.mxu0 0.0
      %263 = vmatprep.subr.mxu0 0.0
      %264 = vmatpush1.xpose.msra.mxu0 0.0
      %265 = vmatprep.subr.mxu0 0.0
      %266 = vmatpush1.xpose.msra.mxu0 0.0
      %267 = vmatprep.subr.mxu0 0.0
      %268 = vmatpush1.xpose.msra.mxu0 0.0
      %269 = vmatprep.subr.mxu0 0.0
      %270 = vmatpush1.xpose.msra.mxu0 0.0
      %271 = vmatprep.subr.mxu0 0.0
      %272 = vmatpush1.xpose.msra.mxu0 0.0
      %273 = vmatprep.subr.mxu0 0.0
      %274 = vmatpush1.xpose.msra.mxu0 0.0
      %275 = vmatprep.subr.mxu0 0.0
      %276 = vmatpush1.xpose.msra.mxu0 0.0
      %277 = vmatprep.subr.mxu0 0.0
      %278 = vmatpush1.xpose.msra.mxu0 0.0
      %279 = vmatprep.subr.mxu0 0.0
      %280 = vmatpush1.xpose.msra.mxu0 0.0
      %281 = vmatprep.subr.mxu0 0.0
      %282 = vmatpush1.xpose.msra.mxu0 0.0
      %283 = vmatprep.subr.mxu0 0.0
      %284 = vmatpush1.xpose.msra.mxu0 0.0
      %285 = vmatprep.subr.mxu0 0.0
      %286 = vmatpush1.xpose.msra.mxu0 0.0
      %287 = vmatprep.subr.mxu0 0.0
      %288 = vmatpush1.xpose.msra.mxu0 0.0
      %289 = vmatprep.subr.mxu0 0.0
      %290 = vmatpush1.xpose.msra.mxu0 0.0
      %291 = vmatprep.subr.mxu0 0.0
      %292 = vmatpush1.xpose.msra.mxu0 0.0
      %293 = vmatprep.subr.mxu0 0.0
      %294 = vmatpush1.xpose.msra.mxu0 0.0
      %295 = vmatprep.subr.mxu0 0.0
      %296 = vmatpush1.xpose.msra.mxu0 0.0
      %297 = vmatprep.subr.mxu0 0.0
      %298 = vmatpush1.xpose.msra.mxu0 0.0
      %299 = vmatprep.subr.mxu0 0.0
      %300 = vmatpush1.xpose.msra.mxu0 0.0
      %301 = vmatprep.subr.mxu0 0.0
      %302 = vmatpush1.xpose.msra.mxu0 0.0
      %303 = vmatprep.subr.mxu0 0.0
      %304 = vmatpush1.xpose.msra.mxu0 0.0
      %305 = vmatprep.subr.mxu0 0.0
      %306 = vmatpush1.xpose.msra.mxu0 0.0
      %307 = vmatprep.subr.mxu0 0.0
      %308 = vmatpush1.xpose.msra.mxu0 0.0
      %309 = vmatprep.subr.mxu0 0.0
      %310 = vmatpush1.xpose.msra.mxu0 0.0
      %311 = vmatprep.subr.mxu0 0.0
      %312 = vmatpush1.xpose.msra.mxu0 0.0
      %313 = vmatprep.subr.mxu0 0.0
      %314 = vmatpush1.xpose.msra.mxu0 0.0
      %315 = vmatprep.subr.mxu0 0.0
      %316 = vmatpush1.xpose.msra.mxu0 0.0
      %317 = vmatprep.subr.mxu0 0.0
      %318 = vmatpush1.xpose.msra.mxu0 0.0
      %319 = vmatprep.mubr.f32.mxu0 0.0
      %320 = vmatmul.mubr.f32.gmra.mrb[0].mxu0 1.0
      %v321 = vpop.f32.mrb[0].mxu0
      %v322 = vadd.f32 0.0, %v321
      %v323 = vpop.f32.mrb[0].mxu0
      %324 = vdwg.mxu0
      %v325 = vmul.f32 %v182, %v182
      %326 = vmatprep.subr.mxu0 0.0
      %327 = vmatpush1.xpose.msra.mxu0 %v325
      %328 = vmatprep.subr.mxu0 0.0
      %329 = vmatpush1.xpose.msra.mxu0 0.0
      %330 = vmatprep.subr.mxu0 0.0
      %331 = vmatpush1.xpose.msra.mxu0 0.0
      %332 = vmatprep.subr.mxu0 0.0
      %333 = vmatpush1.xpose.msra.mxu0 0.0
      %334 = vmatprep.subr.mxu0 0.0
      %335 = vmatpush1.xpose.msra.mxu0 0.0
      %336 = vmatprep.subr.mxu0 0.0
      %337 = vmatpush1.xpose.msra.mxu0 0.0
      %338 = vmatprep.subr.mxu0 0.0
      %339 = vmatpush1.xpose.msra.mxu0 0.0
      %340 = vmatprep.subr.mxu0 0.0
      %341 = vmatpush1.xpose.msra.mxu0 0.0
      %342 = vmatprep.subr.mxu0 0.0
      %343 = vmatpush1.xpose.msra.mxu0 0.0
      %344 = vmatprep.subr.mxu0 0.0
      %345 = vmatpush1.xpose.msra.mxu0 0.0
      %346 = vmatprep.subr.mxu0 0.0
      %347 = vmatpush1.xpose.msra.mxu0 0.0
      %348 = vmatprep.subr.mxu0 0.0
      %349 = vmatpush1.xpose.msra.mxu0 0.0
      %350 = vmatprep.subr.mxu0 0.0
      %351 = vmatpush1.xpose.msra.mxu0 0.0
      %352 = vmatprep.subr.mxu0 0.0
      %353 = vmatpush1.xpose.msra.mxu0 0.0
      %354 = vmatprep.subr.mxu0 0.0
      %355 = vmatpush1.xpose.msra.mxu0 0.0
      %356 = vmatprep.subr.mxu0 0.0
      %357 = vmatpush1.xpose.msra.mxu0 0.0
      %358 = vmatprep.subr.mxu0 0.0
      %359 = vmatpush1.xpose.msra.mxu0 0.0
      %360 = vmatprep.subr.mxu0 0.0
      %361 = vmatpush1.xpose.msra.mxu0 0.0
      %362 = vmatprep.subr.mxu0 0.0
      %363 = vmatpush1.xpose.msra.mxu0 0.0
      %364 = vmatprep.subr.mxu0 0.0
      %365 = vmatpush1.xpose.msra.mxu0 0.0
      %366 = vmatprep.subr.mxu0 0.0
      %367 = vmatpush1.xpose.msra.mxu0 0.0
      %368 = vmatprep.subr.mxu0 0.0
      %369 = vmatpush1.xpose.msra.mxu0 0.0
      %370 = vmatprep.subr.mxu0 0.0
      %371 = vmatpush1.xpose.msra.mxu0 0.0
      %372 = vmatprep.subr.mxu0 0.0
      %373 = vmatpush1.xpose.msra.mxu0 0.0
      %374 = vmatprep.subr.mxu0 0.0
      %375 = vmatpush1.xpose.msra.mxu0 0.0
      %376 = vmatprep.subr.mxu0 0.0
      %377 = vmatpush1.xpose.msra.mxu0 0.0
      %378 = vmatprep.subr.mxu0 0.0
      %379 = vmatpush1.xpose.msra.mxu0 0.0
      %380 = vmatprep.subr.mxu0 0.0
      %381 = vmatpush1.xpose.msra.mxu0 0.0
      %382 = vmatprep.subr.mxu0 0.0
      %383 = vmatpush1.xpose.msra.mxu0 0.0
      %384 = vmatprep.subr.mxu0 0.0
      %385 = vmatpush1.xpose.msra.mxu0 0.0
      %386 = vmatprep.subr.mxu0 0.0
      %387 = vmatpush1.xpose.msra.mxu0 0.0
      %388 = vmatprep.subr.mxu0 0.0
      %389 = vmatpush1.xpose.msra.mxu0 0.0
      %390 = vmatprep.mubr.f32.mxu0 0.0
      %391 = vmatmul.mubr.f32.gmra.mrb[0].mxu0 1.0
      %v392 = vpop.f32.mrb[0].mxu0
      %v393 = vadd.f32 0.0, %v392
      %v394 = vpop.f32.mrb[0].mxu0
      %395 = vdwg.mxu0
      %v396 = vld [vmem:[%s2] sm:$0x1]
      %v397 = vld [vmem:[%s3] sm:$0x1]
      %v398 = vmul.f32 %v396, %v397
      %v399 = vmul.f32 %v251, %v398
      %v400 = vmul.f32 %v396, %v396
      %v401 = vmul.f32 %v322, %v400
      %v402 = vmul.f32 %v397, %v397
      %v403 = vmul.f32 %v393, %v402
      %v404 = vmax.f32 %v401, 1e-16
      %v405 = vrsqrt.pop %v404
      %v406 = vmul.f32 %v399, %v405
      %v407 = vmax.f32 %v403, 1e-16
      %v408 = vrsqrt.pop %v407
      %v409 = vmul.f32 %v406, %v408
      %vm410 = vcmp.gt.f32.partialorder %v409, 0.3
      %vm411 = vcmp.lt.f32.partialorder %v409, -0.3
      %v412 = vsel %vm411, 4294967295, 0
      %v413 = vsel %vm410, 1, %v412
      %vm414 = vcmask 57344
      %415 = vst.msk [vmem:[#allocation8] sm:$0x1] %vm414, %v413
      %v416 = vld [vmem:[%s4] sm:$0x1]
      %v417 = vlaneseq
      %v418 = vand.u32 %v417, 127
      %vm419 = vcmp.lt.s32.totalorder %v418, 4
      %v420 = vsel %vm419, 1, 0
      %v421 = vcvt.s32.f32 %v420
      %v422 = vsub.f32 %v409, %v416
      %v423 = vmul.f32 %v422, %v421
      %v424 = vmul.f32 %v423, %v423
      %v425 = vsel %vm414, %v424, 0.0
      %426 = vadd.xlane.f32.xlu0 %v425
      %v427 = vpop.xlane.xlu0 %426
      %v428 = vrot.slane %v427, 4
      %v429 = vadd.f32 %v427, %v428
      %v430 = vrot.slane %v429, 2
      %v431 = vadd.f32 %v429, %v430
      %v432 = vrot.slane %v431, 1
      %v433 = vadd.f32 %v431, %v432
      %s434 = vtos %v433
      %s435 = smul.f32 %s434, 0.25
      %v436 = vcvt.f32.s32.to.zero.pseudo %v416
      %vm437 = vcmp.eq.s32.totalorder %v413, %v436
      %v438 = vsel %vm437, 1, 0
      %v439 = vcvt.s32.f32 %v438
      %v440 = vmul.f32 %v439, %v421
      %v441 = vsel %vm414, %v440, 0.0
      %442 = vadd.xlane.f32.xlu0 %v441
      %v443 = vpop.xlane.xlu0 %442
      %v444 = vrot.slane %v443, 4
      %v445 = vadd.f32 %v443, %v444
      %v446 = vrot.slane %v445, 2
      %v447 = vadd.f32 %v445, %v446
      %v448 = vrot.slane %v447, 1
      %v449 = vadd.f32 %v447, %v448
      %s450 = vtos %v449
      %s451 = smul.f32 %s450, 0.25
      %v452 = vstv %s435
      %vm453 = vcmask 0
      %454 = vst.msk [vmem:[#allocation9] sm:$0x1] %vm453, %v452
      %v455 = vstv %s451
      %vm456 = vcmask 8200
      %457 = vst.msk [vmem:[#allocation9] sm:$0x1] %vm456, %v455
    $region37: #{tpu_custom_call.1} parent=1 // pred_fallthru
      _
    // Predicated region
    $region38: #{tpu_custom_call.1} parent=1 // pred_check
      _
    $region39: #{tpu_custom_call.1} parent=1 // pred_check_branch
      %459 = sbr.rel (0) target = $region41
    $region40: #{tpu_custom_call.1} parent=1 // pred_region
      %s461 = ssub.s32 16, 16
      %462 = vsyncadd [#allocation5], %s461
      %s464 = sshll.u32 [#allocation8], 4
      %s465 = int_to_ptr.vmem [resolvable:$true] %s464
      %467 = dma.vmem_to_hbm [thread:$0]  %s465, 16, %s5, [#allocation5]
    $region41: #{tpu_custom_call.1} parent=1 // pred_fallthru
      _
    // Predicated region
    $region42: #{tpu_custom_call.1} parent=1 // pred_check
      _
    $region43: #{tpu_custom_call.1} parent=1 // pred_check_branch
      %469 = sbr.rel (0) target = $region45
    $region44: #{tpu_custom_call.1} parent=1 // pred_region
      %s471 = ssub.s32 16, 16
      %472 = vsyncadd [#allocation10], %s471
      %s474 = sshll.u32 [#allocation9], 4
      %s475 = int_to_ptr.vmem [resolvable:$true] %s474
      %477 = dma.vmem_to_hbm [thread:$0]  %s475, 16, %s6, [#allocation10]
    $region45: #{tpu_custom_call.1} parent=1 // pred_fallthru
      _
    // Predicated region
    $region46: #{tpu_custom_call.1} parent=1 // pred_check
      _
    $region47: #{tpu_custom_call.1} parent=1 // pred_check_branch
      %479 = sbr.rel (0) target = $region49
    $region48: #{tpu_custom_call.1} parent=1 // pred_region
      %480 = dma.done [#allocation5], 16
    $region49: #{tpu_custom_call.1} parent=1 // pred_fallthru
      _
    // Predicated region
    $region50: #{tpu_custom_call.1} parent=1 // pred_check
      _
    $region51: #{tpu_custom_call.1} parent=1 // pred_check_branch
      %482 = sbr.rel (0) target = $region53
    $region52: #{tpu_custom_call.1} parent=1 // pred_region
      %483 = dma.done [#allocation10], 16
    $region53: #{tpu_custom_call.1} parent=1 // pred_fallthru
      _
    %484 = vsyncpa [#allocation4], 1
    %485 = vsyncpa [#allocation7], 1
    %486 = vsyncpa [#allocation5], 1
    %487 = vsyncpa [#allocation10], 1

</llo_original>
